<compile_context>
chip_gen: v5e
topology: v5e:2x2
jax: 0.10.0
libtpu: 0.0.40
codegen_flags: <defaults>
</compile_context>

<pallas_src>
import functools

import jax
import jax.numpy as jnp
from jax.experimental import pallas as pl
from jax.experimental.pallas import tpu as pltpu


# ---------------------------------------------------------------------------
# Kernels
# ---------------------------------------------------------------------------
def _linear_kernel_acc(x_ref, w_ref, b_ref, o_ref, acc_ref, *, precision):
    """Multi-K-tile path: f32 VMEM accumulator; init at k==0, finalize at last."""
    k = pl.program_id(2)

    @pl.when(k == 0)
    def _init():
        acc_ref[...] = jnp.zeros_like(acc_ref)

    # Hot path: pure MXU matmul into the f32 accumulator.
    acc_ref[...] += jnp.dot(
        x_ref[...], w_ref[...],
        preferred_element_type=jnp.float32, precision=precision)

    @pl.when(k == pl.num_programs(2) - 1)
    def _finalize():
        # Single fused (acc + bias) -> cast -> store per output tile.
        o_ref[...] = (acc_ref[...] + b_ref[...]).astype(o_ref.dtype)


def _linear_kernel_single_k(x_ref, w_ref, b_ref, o_ref, *, precision):
    """K fits a single tile: no accumulator scratch (saves one (tm,tn) f32
    store plus reloads per output tile)."""
    acc = jnp.dot(x_ref[...], w_ref[...],
                  preferred_element_type=jnp.float32, precision=precision)
    o_ref[...] = (acc + b_ref[...]).astype(o_ref.dtype)


# ---------------------------------------------------------------------------
# Helpers
# ---------------------------------------------------------------------------
def _round_up(a, b):
    return ((a + b - 1) // b) * b


def _sublane_multiple(dtype):
    # One vreg packs [8,128] f32 / [16,128] bf16 / [32,128] int8|fp8 rows.
    return {4: 8, 2: 16, 1: 32}.get(jnp.dtype(dtype).itemsize, 8)


def _tpu_vmem_bytes():
    """Physical VMEM per core; conservative (v7x-sized) fallback."""
    try:
        info = pltpu.get_tpu_info()
        return int(getattr(info, "vmem_capacity_bytes", 64 << 20))
    except Exception:
        return 64 << 20


def _footprint_bytes(tm, tn, tk, in_bytes, out_bytes, w_buffers):
    x_buf = 2 * tm * tk * in_bytes          # double-buffered activations
    w_buf = w_buffers * tk * tn * in_bytes  # weight panel (dominant stream)
    o_buf = 2 * tm * tn * out_bytes         # output tile
    acc = tm * tn * 4                       # f32 accumulator scratch
    b_buf = 2 * tn * 4                      # bias row (f32)
    return x_buf + w_buf + o_buf + acc + b_buf


# ---------------------------------------------------------------------------
# Layer wrapper (pads W / bias exactly once)
# ---------------------------------------------------------------------------
class PallasLinear:
    """y = x @ W + b with weight/bias padding hoisted to construction time."""

    TM_CAP = 512
    TN_CAP = 1024
    TK_CAP = 2048

    def __init__(self, weights, bias, *, tn=None, tk=None,
                 mxu_dtype=None, precision=None, weight_buffers=2):
        K, N = weights.shape
        assert bias.shape == (N,), "bias shape mismatch"
        self.K, self.N = int(K), int(N)
        self.precision = precision
        self.weight_buffers = int(weight_buffers)

        # Optional bf16 MXU path: cast W once here, x per call; f32 accumulate.
        self.compute_dtype = (jnp.dtype(mxu_dtype) if mxu_dtype is not None
                              else jnp.dtype(weights.dtype))
        self.in_bytes = self.compute_dtype.itemsize

        self.vmem_phys = _tpu_vmem_bytes()
        budget = int(self.vmem_phys * 0.6)   # ~76 MiB v5e/v6e, ~38 MiB v7x

        # MXU-occupancy granularity: 256-wide panels when the dim allows
        # (v6e/v7x 2x256x256 MXU), otherwise 128 (v5e / small dims).
        gK = 256 if self.K >= 256 else 128
        gN = 256 if self.N >= 256 else 128

        tn_auto, tk_auto = tn is None, tk is None
        tn = min(_round_up(self.N, gN), self.TN_CAP) if tn_auto else int(tn)
        tk = min(_round_up(self.K, gK), self.TK_CAP) if tk_auto else int(tk)

        # Shrink auto-chosen tiles until the worst-case (tm = TM_CAP)
        # double-buffered footprint fits the per-generation budget.
        while _footprint_bytes(self.TM_CAP, tn, tk, self.in_bytes, 4,
                               self.weight_buffers) > budget:
            if tk_auto and tk > gK:
                tk = max(gK, _round_up(tk // 2, gK))
            elif tn_auto and tn > gN:
                tn = max(gN, _round_up(tn // 2, gN))
            else:
                break
        self.tn, self.tk = tn, tk

        self.K_pad = _round_up(self.K, tk)
        self.N_pad = _round_up(self.N, tn)

        # Pad (and optionally cast) W / bias ONCE -- not per forward call.
        w = weights.astype(self.compute_dtype)
        if (self.K_pad, self.N_pad) != (self.K, self.N):
            w = jnp.pad(w, ((0, self.K_pad - self.K), (0, self.N_pad - self.N)))
        self.w_padded = w
        b = bias.astype(jnp.float32)
        if self.N_pad != self.N:
            b = jnp.pad(b, (0, self.N_pad - self.N))
        self.b_padded = b.reshape(1, self.N_pad)

    def __call__(self, x, *, tm=None):
        if x.shape[0] == 0:
            raise RuntimeError("Tensor has no data (empty batch dimension)")
        M, K = x.shape
        assert K == self.K, "input_dim mismatch"
        out_dtype = x.dtype

        if x.dtype != self.compute_dtype:
            x = x.astype(self.compute_dtype)

        # Reuse-aware tm: small M -> keep the whole activation panel resident
        # (fewest full-W re-reads); large M -> cap at 512 rows.
        sub = _sublane_multiple(self.compute_dtype)
        if tm is None:
            tm = min(_round_up(M, sub), self.TM_CAP)
        M_pad = _round_up(M, tm)
        K_pad, N_pad = self.K_pad, self.N_pad

        x_p = x
        if (M_pad, K_pad) != (M, K):
            x_p = jnp.pad(x, ((0, M_pad - M), (0, K_pad - K)))

        # Keep >= 2 blocks on the "parallel" grid axes when possible so the
        # second TensorCore on v7x gets work; costs ~one extra grid step on
        # single-TC chips.
        tn_eff = self.tn
        if (M_pad // tm) * (N_pad // tn_eff) == 1 and tn_eff % 256 == 0:
            tn_eff //= 2

        grid_m = M_pad // tm
        grid_n = N_pad // tn_eff
        grid_k = K_pad // self.tk

        out_bytes = jnp.dtype(out_dtype).itemsize
        footprint = _footprint_bytes(tm, tn_eff, self.tk, self.in_bytes,
                                     out_bytes, self.weight_buffers)
        vmem_limit = None
        if footprint + (4 << 20) > (12 << 20):   # past v5e's 16 MiB default
            vmem_limit = min(int(self.vmem_phys * 0.9), footprint + (12 << 20))

        cost = pl.CostEstimate(
            flops=2 * M_pad * K_pad * N_pad,
            transcendentals=0,
            bytes_accessed=int(self.in_bytes * (M_pad * K_pad + K_pad * N_pad)
                               + 4 * N_pad + out_bytes * M_pad * N_pad),
        )

        if self.weight_buffers != 2:
            # Triple-buffer the dominant (weight) stream only when profiling
            # shows exposed DMA; otherwise it just burns VMEM.
            def w_spec(shape, imap):
                return pl.BlockSpec(shape, imap,
                                    pipeline_mode=pl.Buffered(self.weight_buffers))
        else:
            def w_spec(shape, imap):
                return pl.BlockSpec(shape, imap)

        if grid_k == 1:
            kernel = functools.partial(_linear_kernel_single_k,
                                       precision=self.precision)
            grid = (grid_m, grid_n)
            in_specs = [
                pl.BlockSpec((tm, self.tk), lambda i, j: (i, 0)),
                w_spec((self.tk, tn_eff), lambda i, j: (0, j)),
                pl.BlockSpec((1, tn_eff), lambda i, j: (0, j)),
            ]
            out_specs = pl.BlockSpec((tm, tn_eff), lambda i, j: (i, j))
            scratch_shapes = []
            sem = ("parallel", "parallel")
        else:
            kernel = functools.partial(_linear_kernel_acc,
                                       precision=self.precision)
            grid = (grid_m, grid_n, grid_k)
            in_specs = [
                pl.BlockSpec((tm, self.tk), lambda i, j, k: (i, k)),
                w_spec((self.tk, tn_eff), lambda i, j, k: (k, j)),
                pl.BlockSpec((1, tn_eff), lambda i, j, k: (0, j)),
            ]
            out_specs = pl.BlockSpec((tm, tn_eff), lambda i, j, k: (i, j))
            scratch_shapes = [pltpu.VMEM((tm, tn_eff), jnp.float32)]
            sem = ("parallel", "parallel", "arbitrary")

        out = pl.pallas_call(
            kernel,
            out_shape=jax.ShapeDtypeStruct((M_pad, N_pad), out_dtype),
            grid_spec=pltpu.PrefetchScalarGridSpec(
                num_scalar_prefetch=0,
                grid=grid,
                in_specs=in_specs,
                out_specs=out_specs,
                scratch_shapes=scratch_shapes,
            ),
            compiler_params=pltpu.CompilerParams(
                dimension_semantics=sem,
                vmem_limit_bytes=vmem_limit,
            ),
            cost_estimate=cost,
        )(x_p, self.w_padded, self.b_padded)

        if M_pad != M or N_pad != self.N:
            out = out[:M, :self.N]
        return out


def linear_forward(x, weights, bias, *, tm=None, **layer_kwargs):
    """One-shot functional wrapper (re-pads W/bias on every call).

    Prefer constructing `PallasLinear` once per layer so the padding / cast is
    hoisted out of the per-call path."""
    return PallasLinear(weights, bias, **layer_kwargs)(x, tm=tm)


# ---------------------------------------------------------------------------
# Demo / self-test
# ---------------------------------------------------------------------------
if __name__ == "__main__":
    key = jax.random.PRNGKey(0)
    k_x, k_w, k_x2, k_w2, k_b2, k_x3, k_w3, k_b3 = jax.random.split(key, 8)

    # --- Test 1: module-demo shapes (single-K fast path, lane padding) -----
    batch, input_dim, output_dim = 8, 32, 32
    weights = jax.random.normal(k_w, (input_dim, output_dim), dtype=jnp.float32)
    bias = jnp.zeros((output_dim,), dtype=jnp.float32)
    x = jax.random.normal(k_x, (batch, input_dim), dtype=jnp.float32)

    y = jax.block_until_ready(linear_forward(x, weights, bias))
    y_ref = x @ weights + bias
    assert y.shape == (batch, output_dim)
    assert jnp.allclose(y, y_ref, atol=1e-5, rtol=1e-5)

    # --- Test 2: multi-tile grid + K-accumulation path (forced small tiles) -
    M2, K2, N2 = 16, 512, 256
    x2 = jax.random.normal(k_x2, (M2, K2), dtype=jnp.float32)
    w2 = jax.random.normal(k_w2, (K2, N2), dtype=jnp.float32)
    b2 = jax.random.normal(k_b2, (N2,), dtype=jnp.float32)

    layer2 = PallasLinear(w2, b2, tn=128, tk=128)       # grid (2, 2, 4)
    y2 = jax.block_until_ready(layer2(x2, tm=8))
    y2_ref = x2 @ w2 + b2
    assert jnp.allclose(y2, y2_ref, atol=1e-4, rtol=1e-4)

    # --- Test 3: opt-in bf16 MXU path (f32 accumulation, loose tolerance) ---
    M3, K3, N3 = 16, 128, 128
    x3 = jax.random.normal(k_x3, (M3, K3), dtype=jnp.float32)
    w3 = jax.random.normal(k_w3, (K3, N3), dtype=jnp.float32)
    b3 = jax.random.normal(k_b3, (N3,), dtype=jnp.float32)

    layer3 = PallasLinear(w3, b3, mxu_dtype=jnp.bfloat16)
    y3 = jax.block_until_ready(layer3(x3))
    y3_ref = x3 @ w3 + b3
    assert y3.dtype == x3.dtype
    assert jnp.allclose(y3, y3_ref, atol=0.5, rtol=0.05)

    # --- Empty-batch guard matches the PyTorch module -----------------------
    try:
        linear_forward(jnp.zeros((0, input_dim), jnp.float32), weights, bias)
        raise AssertionError("expected RuntimeError for empty batch")
    except RuntimeError:
        pass

    print("KERNEL_OK")
</pallas_src>

<mosaic_0001>
module attributes {stable_mosaic.version = 11 : i64} {
  func.func @_linear_kernel_single_k(%arg0: i32, %arg1: i32, %arg2: memref<8x128xf32, #tpu.memory_space<vmem>>, %arg3: memref<128x128xf32, #tpu.memory_space<vmem>>, %arg4: memref<1x128xf32, #tpu.memory_space<vmem>>, %arg5: memref<8x128xf32, #tpu.memory_space<vmem>>) attributes {dimension_semantics = [#tpu.dimension_semantics<parallel>, #tpu.dimension_semantics<parallel>], iteration_bounds = array<i64: 1, 1>, scalar_prefetch = 0 : i64, scratch_operands = 0 : i64, tpu.core_type = #tpu.core_type<tc>, window_params = [{transform_indices = @transform_0, window_bounds = array<i64: 8, 128>}, {transform_indices = @transform_1, window_bounds = array<i64: 128, 128>}, {transform_indices = @transform_2, window_bounds = array<i64: 1, 128>}, {transform_indices = @transform_3, window_bounds = array<i64: 8, 128>}]} {
    %c0 = arith.constant 0 : index
    %c0_0 = arith.constant 0 : index
    %0 = vector.load %arg2[%c0, %c0_0] : memref<8x128xf32, #tpu.memory_space<vmem>>, vector<8x128xf32>
    %c0_1 = arith.constant 0 : index
    %c0_2 = arith.constant 0 : index
    %1 = vector.load %arg3[%c0_1, %c0_2] : memref<128x128xf32, #tpu.memory_space<vmem>>, vector<128x128xf32>
    %cst = arith.constant dense<0.000000e+00> : vector<8x128xf32>
    %2 = tpu.matmul %0, %1, %cst {dimension_numbers = #tpu.dot_dimension_numbers<[1], [0], [0], [1], [0, 0, 1, 1], [], []>} : vector<8x128xf32>, vector<128x128xf32>, vector<8x128xf32> -> vector<8x128xf32>
    %c0_3 = arith.constant 0 : index
    %c0_4 = arith.constant 0 : index
    %3 = vector.load %arg4[%c0_3, %c0_4] : memref<1x128xf32, #tpu.memory_space<vmem>>, vector<1x128xf32>
    %4 = vector.broadcast %3 : vector<1x128xf32> to vector<8x128xf32>
    %5 = arith.addf %2, %4 : vector<8x128xf32>
    %c0_5 = arith.constant 0 : index
    %c0_6 = arith.constant 0 : index
    %6 = vector.load %arg5[%c0_5, %c0_6] : memref<8x128xf32, #tpu.memory_space<vmem>>, vector<8x128xf32>
    tpu.vector_store %arg5[%c0_5, %c0_6], %5 {strides = array<i32>} : memref<8x128xf32, #tpu.memory_space<vmem>>, vector<8x128xf32>,
    return
  }
  func.func @transform_0(%arg0: i32, %arg1: i32) -> (i32, i32) {
    %c0_i32 = arith.constant 0 : i32
    %c0_i32_0 = arith.constant 0 : i32
    return %arg0, %c0_i32 : i32, i32
  }
  func.func @transform_1(%arg0: i32, %arg1: i32) -> (i32, i32) {
    %c0_i32 = arith.constant 0 : i32
    %c0_i32_0 = arith.constant 0 : i32
    return %c0_i32, %arg1 : i32, i32
  }
  func.func @transform_2(%arg0: i32, %arg1: i32) -> (i32, i32) {
    %c0_i32 = arith.constant 0 : i32
    %c0_i32_0 = arith.constant 0 : i32
    return %c0_i32, %arg1 : i32, i32
  }
  func.func @transform_3(%arg0: i32, %arg1: i32) -> (i32, i32) {
    %c0_i32 = arith.constant 0 : i32
    return %arg0, %arg1 : i32, i32
  }
}

</mosaic_0001>

<llo_original>
// kernel: tpu_custom_call.1
$region0: #{tpu_custom_call.1}
  #allocation0 [shape = 'u32[]', space=smem, size = 0x4, offset = 0x4, fixed_abs, tag = 'smem constant byte address 0x4 - core index']
  #allocation1 [shape = 'u32[72,128]{1,0:T(1,128)}', space=vmem, size = 0x9000, scoped, tag = 'internal scratch']
  %s0 = inlined_call_operand.hbm [shape: f32[8,128], index: 0, kind: input, shape index: {}]
  %s1 = inlined_call_operand.hbm [shape: f32[128,128], index: 1, kind: input, shape index: {}]
  %s2 = inlined_call_operand.vmem [shape: f32[1,128], index: 2, kind: input, shape index: {}]
  %s3 = inlined_call_operand.hbm [shape: f32[8,128], index: 3, kind: output, shape index: {}]
  %s4 = sld [smem:[#allocation0]]
  $region30: #{tpu_custom_call.1} parent=0
    _
  %s6 = ssub.s32 1, %s4
  %s7 = scalar_select 0, %s6, %s4
  $region1: #{tpu_custom_call.1} parent=0
    #allocation2 [shape = 'u8[4096]{0}', space=vmem, size = 0x1000, scoped, tag = 'input window, operand 0, single buffered']
    #allocation3 [shape = 's32[1]{0}', space=sflag, size = 0x4, scoped, tag = 'scoped memory for tpu_custom_call.1']
    #allocation4 [shape = 's32[1]{0}', space=sflag, size = 0x4, scoped, tag = 'scoped memory for tpu_custom_call.1']
    #allocation5 [shape = 'u8[65536]{0}', space=vmem, size = 0x10000, scoped, tag = 'input window, operand 1, single buffered']
    #allocation6 [shape = 's32[1]{0}', space=sflag, size = 0x4, scoped, tag = 'scoped memory for tpu_custom_call.1']
    #allocation7 [shape = 'u8[4096]{0}', space=vmem, size = 0x1000, scoped, tag = 'output window, operand 0, single buffered']
    %8 = vsyncpa [#allocation3], 0
    %9 = vsyncpa [#allocation6], 0
    %10 = vsyncpa [#allocation4], 0
    // Predicated region
    $region2: #{tpu_custom_call.1} parent=1 // pred_check
      _
    $region3: #{tpu_custom_call.1} parent=1 // pred_check_branch
      %12 = sbr.rel (0) target = $region5
    $region4: #{tpu_custom_call.1} parent=1 // pred_region
      %14 = vsyncadd [#allocation3], 0
      %s16 = sshll.u32 %s0, 4
      %s17 = int_to_ptr.hbm [resolvable:$true] %s16
      %s18 = sshll.u32 [#allocation2], 4
      %s19 = int_to_ptr.vmem [resolvable:$true] %s18
      %21 = dma.hbm_to_vmem [thread:$0]  %s17, 128, %s19, [#allocation3]
    $region5: #{tpu_custom_call.1} parent=1 // pred_fallthru
      _
    // Predicated region
    $region6: #{tpu_custom_call.1} parent=1 // pred_check
      _
    $region7: #{tpu_custom_call.1} parent=1 // pred_check_branch
      %23 = sbr.rel (0) target = $region9
    $region8: #{tpu_custom_call.1} parent=1 // pred_region
      %25 = vsyncadd [#allocation6], 0
      %s26 = sshll.u32 %s1, 4
      %s27 = int_to_ptr.hbm [resolvable:$true] %s26
      %s28 = sshll.u32 [#allocation5], 4
      %s29 = int_to_ptr.vmem [resolvable:$true] %s28
      %34 = dma.hbm_to_vmem [thread:$0]  %s27, 2048, %s29, [#allocation6], 128, 128, 8
    $region9: #{tpu_custom_call.1} parent=1 // pred_fallthru
      _
    // Predicated region
    $region10: #{tpu_custom_call.1} parent=1 // pred_check
      _
    $region11: #{tpu_custom_call.1} parent=1 // pred_check_branch
      %36 = sbr.rel (0) target = $region13
    $region12: #{tpu_custom_call.1} parent=1 // pred_region
      _
    $region13: #{tpu_custom_call.1} parent=1 // pred_fallthru
      _
    // Predicated region
    $region14: #{tpu_custom_call.1} parent=1 // pred_check
      _
    $region15: #{tpu_custom_call.1} parent=1 // pred_check_branch
      %38 = sbr.rel (0) target = $region17
    $region16: #{tpu_custom_call.1} parent=1 // pred_region
      %40 = dma.done [#allocation3], 128
    $region17: #{tpu_custom_call.1} parent=1 // pred_fallthru
      _
    // Predicated region
    $region18: #{tpu_custom_call.1} parent=1 // pred_check
      _
    $region19: #{tpu_custom_call.1} parent=1 // pred_check_branch
      %42 = sbr.rel (0) target = $region21
    $region20: #{tpu_custom_call.1} parent=1 // pred_region
      %44 = dma.done [#allocation6], 2048
    $region21: #{tpu_custom_call.1} parent=1 // pred_fallthru
      _
    %v45 = vld [vmem:[#allocation2] sm:$0xff]
    %v46 = vld [vmem:[#allocation5] sm:$0xff]
    %v47 = vld [vmem:[#allocation5 + $0x8] sm:$0xff]
    %v48 = vld [vmem:[#allocation5 + $0x10] sm:$0xff]
    %v49 = vld [vmem:[#allocation5 + $0x18] sm:$0xff]
    %v50 = vld [vmem:[#allocation5 + $0x20] sm:$0xff]
    %v51 = vld [vmem:[#allocation5 + $0x28] sm:$0xff]
    %v52 = vld [vmem:[#allocation5 + $0x30] sm:$0xff]
    %v53 = vld [vmem:[#allocation5 + $0x38] sm:$0xff]
    %v54 = vld [vmem:[#allocation5 + $0x40] sm:$0xff]
    %v55 = vld [vmem:[#allocation5 + $0x48] sm:$0xff]
    %v56 = vld [vmem:[#allocation5 + $0x50] sm:$0xff]
    %v57 = vld [vmem:[#allocation5 + $0x58] sm:$0xff]
    %v58 = vld [vmem:[#allocation5 + $0x60] sm:$0xff]
    %v59 = vld [vmem:[#allocation5 + $0x68] sm:$0xff]
    %v60 = vld [vmem:[#allocation5 + $0x70] sm:$0xff]
    %v61 = vld [vmem:[#allocation5 + $0x78] sm:$0xff]
    %v62 = vld [vmem:[%s2] sm:$0x1]
    %v64 = vperm.slane %v62, 0
    %66 = vmatpush.msra.mxu0 %v61
    %67 = vmatpush.msra.mxu0 %v60
    %68 = vmatpush.msra.mxu0 %v59
    %69 = vmatpush.msra.mxu0 %v58
    %70 = vmatpush.msra.mxu0 %v57
    %71 = vmatpush.msra.mxu0 %v56
    %72 = vmatpush.msra.mxu0 %v55
    %73 = vmatpush.msra.mxu0 %v54
    %74 = vmatpush.msra.mxu0 %v53
    %75 = vmatpush.msra.mxu0 %v52
    %76 = vmatpush.msra.mxu0 %v51
    %77 = vmatpush.msra.mxu0 %v50
    %78 = vmatpush.msra.mxu0 %v49
    %79 = vmatpush.msra.mxu0 %v48
    %80 = vmatpush.msra.mxu0 %v47
    %81 = vmatpush.msra.mxu0 %v46
    %82 = vmatmul.f32.gmra.mxu0 %v45
    %v83 = vpop.f32.mrf.mxu0
    %v84 = vadd.f32 %v64, %v83
    %85 = vdwg.mxu0
    %86 = vst [vmem:[#allocation7] sm:$0xff] %v84
    // Predicated region
    $region22: #{tpu_custom_call.1} parent=1 // pred_check
      _
    $region23: #{tpu_custom_call.1} parent=1 // pred_check_branch
      %88 = sbr.rel (0) target = $region25
    $region24: #{tpu_custom_call.1} parent=1 // pred_region
      %90 = vsyncadd [#allocation4], 0
      %s92 = sshll.u32 [#allocation7], 4
      %s93 = int_to_ptr.vmem [resolvable:$true] %s92
      %s94 = sshll.u32 %s3, 4
      %s95 = int_to_ptr.hbm [resolvable:$true] %s94
      %97 = dma.vmem_to_hbm [thread:$0]  %s93, 128, %s95, [#allocation4]
    $region25: #{tpu_custom_call.1} parent=1 // pred_fallthru
      _
    // Predicated region
    $region26: #{tpu_custom_call.1} parent=1 // pred_check
      _
    $region27: #{tpu_custom_call.1} parent=1 // pred_check_branch
      %99 = sbr.rel (0) target = $region29
    $region28: #{tpu_custom_call.1} parent=1 // pred_region
      %101 = dma.done [#allocation4], 128
    $region29: #{tpu_custom_call.1} parent=1 // pred_fallthru
      _
    %102 = vsyncpa [#allocation3], 1
    %103 = vsyncpa [#allocation6], 1
    %104 = vsyncpa [#allocation4], 1

</llo_original>
